<compile_context>
chip_gen: v5e
topology: v5e:2x2
jax: 0.10.0
libtpu: 0.0.40
codegen_flags: <defaults>
</compile_context>

<pallas_src>
import jax
import jax.numpy as jnp
from jax.experimental import pallas as pl
from jax.experimental.pallas import tpu as pltpu


def _kernel_fwd(xT_ref, w1_ref, b1_ref, w2_ref, b2_ref, o_ref):
    # xT_ref : [A, TB]    x tile, lane-dense batch, any float dtype (f32 or bf16)
    # w1_ref : [A*F, 1]   rows of W1 stacked along sublanes (row a = W1[a, :] as a column)
    # b1_ref : [F, 1]     embedding bias column
    # w2_ref : [F, 1]     head weight column
    # b2_ref : [1]        head bias scalar (SMEM)
    # o_ref  : [1, TB]    lane-dense output row
    A = xT_ref.shape[0]
    F = b1_ref.shape[0]

    # Upcast once after the (possibly bf16) DMA; all math below is f32 (v5e-safe).
    x = xT_ref[...].astype(jnp.float32)

    # embedding_model: Linear(A -> F) as an A-term VPU outer-product accumulate:
    #   h[F, TB] = sum_a W1[a, :]^T * x[a, :]
    h = w1_ref[0:F, :] * x[0:1, :]                       # [F,1] * [1,TB] -> [F,TB]
    for a in range(1, A):                                # A is tiny & static -> unrolled
        h = h + w1_ref[a * F:(a + 1) * F, :] * x[a:a + 1, :]

    # bias + ReLU (VPU, f32)
    h = jnp.maximum(h + b1_ref[...], 0.0)

    # head Linear(F -> 1): VPU multiply + sublane (XLU) reduce; no N=1 MXU matmul.
    y = jnp.sum(h * w2_ref[...], axis=0, keepdims=True) + b2_ref[0]
    o_ref[...] = y.astype(o_ref.dtype)


def _pick_tb(B, tb):
    """Batch (lane) tile size: large to amortize ~0.35us/step overhead, multiple of 128,
    and small enough to keep >=2 grid steps (v7x has 2 TensorCores)."""
    if tb is None:
        tb = 16384
    tb = max(128, (tb // 128) * 128)           # lane-dense: multiple of 128
    tb = min(tb, 128 * pl.cdiv(B, 128))        # no point exceeding the (rounded) batch
    if B > 2 * 128:
        tb = min(tb, 128 * pl.cdiv(B, 2 * 128))  # keep >= 2 tiles for v7x / pipelining
    return tb


def kernel_forward_feature_major(xT, w1, b1, w2, b2, *, tb=None):
    """Zero-copy Pallas forward.  Preferred path: keep x feature-major upstream.

    xT : [A, B]  attribute vectors, feature-major (f32 or bf16 — bf16 halves HBM traffic)
    w1 : [A, F]  embedding Linear weight (stored [in, out])
    b1 : [1, F]  embedding Linear bias
    w2 : [F, 1]  head Linear weight
    b2 : [1]     head Linear bias
    returns [B, 1] f32 scores.
    """
    A, B = xT.shape
    F = w1.shape[1]

    tb = _pick_tb(B, tb)
    n_tiles = pl.cdiv(B, tb)

    # Tiny parameter repacks (a few hundred bytes; done once, resident across the grid).
    w1rows = jnp.reshape(w1.astype(jnp.float32), (A * F, 1))   # row a -> sublanes a*F..a*F+F-1
    b1c = jnp.reshape(b1, (F, 1)).astype(jnp.float32)          # [F, 1]
    w2c = jnp.reshape(w2, (F, 1)).astype(jnp.float32)          # [F, 1]
    b2s = jnp.reshape(b2, (1,)).astype(jnp.float32)            # [1] -> SMEM

    out = pl.pallas_call(
        _kernel_fwd,
        out_shape=jax.ShapeDtypeStruct((1, B), jnp.float32),
        grid=(n_tiles,),
        in_specs=[
            pl.BlockSpec((A, tb), lambda i: (0, i)),       # x tile, lane-dense batch
            pl.BlockSpec((A * F, 1), lambda i: (0, 0)),    # W1 rows, resident
            pl.BlockSpec((F, 1), lambda i: (0, 0)),        # b1 column, resident
            pl.BlockSpec((F, 1), lambda i: (0, 0)),        # w2 column, resident
            pl.BlockSpec(memory_space=pltpu.MemorySpace.SMEM),  # b2 scalar
        ],
        out_specs=pl.BlockSpec((1, tb), lambda i: (0, i)),  # lane-dense output row
        compiler_params=pltpu.CompilerParams(
            dimension_semantics=("parallel",),              # batch axis -> both TCs on v7x
            vmem_limit_bytes=32 * 1024 * 1024,
        ),
        cost_estimate=pl.CostEstimate(
            flops=2 * B * A * F + 3 * B * F,
            transcendentals=0,
            bytes_accessed=B * A * xT.dtype.itemsize + 4 * B + 4 * (A * F + 2 * F + 1),
        ),
    )(xT, w1rows, b1c, w2c, b2s)

    # Module's output shape [B, 1].  Ragged batch tails were handled by Pallas
    # partial-tile masking, so there is no padding to strip.
    return jnp.reshape(out[0, :], (B, 1))


def kernel_forward(x, w1, b1, w2, b2, *, tb=None):
    """Module-layout compatibility path (attr_vec as [B, A], PyTorch semantics).

    Does a plain x.T (no zero-pad scatter).  For large batches prefer storing the
    attribute matrix feature-major and calling kernel_forward_feature_major directly
    (zero-copy).
    """
    return kernel_forward_feature_major(jnp.transpose(x), w1, b1, w2, b2, tb=tb)


def init_params(key, num_attrs, num_features):
    """Deterministic parameter init (synthetic; mirrors the module's shapes)."""
    k1, k2, k3, k4 = jax.random.split(key, 4)
    # embedding_model: Linear(num_attrs -> num_features), stored [in, out]
    w1 = jax.random.normal(k1, (num_attrs, num_features), jnp.float32) * 0.1
    b1 = jax.random.normal(k2, (1, num_features), jnp.float32) * 0.01
    # head: Linear(num_features -> 1)
    w2 = jax.random.normal(k3, (num_features, 1), jnp.float32) * 0.1
    b2 = jax.random.normal(k4, (1,), jnp.float32) * 0.01
    # temp_param = zeros([num_attrs]); unused by forward(), kept for parity.
    temp_param = jnp.zeros((num_attrs,), jnp.float32)
    return w1, b1, w2, b2, temp_param


def _reference(x_f32, w1, b1, w2, b2):
    return jnp.maximum(x_f32 @ w1 + b1, 0.0) @ w2 + b2.reshape(1, 1)


if __name__ == "__main__":
    num_attrs = 4
    num_features = 32

    key = jax.random.PRNGKey(0)
    k_params, k_x1, k_x2 = jax.random.split(key, 3)
    w1, b1, w2, b2, _temp = init_params(k_params, num_attrs, num_features)

    # 1) Module-layout path: attr_vec batch [batch, num_attrs] (PyTorch semantics).
    batch = 8
    x = jax.random.randint(k_x1, (batch, num_attrs), 0, 5).astype(jnp.float32)
    out = jax.block_until_ready(kernel_forward(x, w1, b1, w2, b2))
    ref = _reference(x, w1, b1, w2, b2)
    assert out.shape == (batch, 1), out.shape
    assert jnp.allclose(out, ref, atol=1e-5, rtol=1e-5), (out, ref)

    # 2) Feature-major zero-copy path with a multi-tile grid + ragged last tile.
    batch2 = 300
    x2 = jax.random.randint(k_x2, (batch2, num_attrs), 0, 5).astype(jnp.float32)
    xT2 = jnp.transpose(x2)  # production data would already be stored [A, B]
    out2 = jax.block_until_ready(kernel_forward_feature_major(xT2, w1, b1, w2, b2))
    ref2 = _reference(x2, w1, b1, w2, b2)
    assert out2.shape == (batch2, 1), out2.shape
    assert jnp.allclose(out2, ref2, atol=1e-5, rtol=1e-5), (out2, ref2)

    # 3) bf16 streaming of x (halves dominant HBM traffic), f32 math in-kernel.
    xT2_bf16 = xT2.astype(jnp.bfloat16)
    out3 = jax.block_until_ready(kernel_forward_feature_major(xT2_bf16, w1, b1, w2, b2))
    ref3 = _reference(jnp.transpose(xT2_bf16).astype(jnp.float32), w1, b1, w2, b2)
    assert out3.shape == (batch2, 1), out3.shape
    assert jnp.allclose(out3, ref3, atol=1e-4, rtol=1e-4), (out3, ref3)

    print("KERNEL_OK")
</pallas_src>

<mosaic_0001>
module attributes {stable_mosaic.version = 11 : i64} {
  func.func @_kernel_fwd(%arg0: i32, %arg1: memref<4x128xf32, #tpu.memory_space<vmem>>, %arg2: memref<128x1xf32, #tpu.memory_space<vmem>>, %arg3: memref<32x1xf32, #tpu.memory_space<vmem>>, %arg4: memref<32x1xf32, #tpu.memory_space<vmem>>, %arg5: memref<1xf32, #tpu.memory_space<smem>>, %arg6: memref<1x128xf32, #tpu.memory_space<vmem>>) attributes {dimension_semantics = [#tpu.dimension_semantics<parallel>], iteration_bounds = array<i64: 1>, scalar_prefetch = 0 : i64, scratch_operands = 0 : i64, tpu.core_type = #tpu.core_type<tc>, window_params = [{transform_indices = @transform_0, window_bounds = array<i64: 4, 128>}, {pipeline_mode = #tpu.pipeline_mode<synchronous>, transform_indices = @transform_1, window_bounds = array<i64: 128, 1>}, {pipeline_mode = #tpu.pipeline_mode<synchronous>, transform_indices = @transform_2, window_bounds = array<i64: 32, 1>}, {pipeline_mode = #tpu.pipeline_mode<synchronous>, transform_indices = @transform_3, window_bounds = array<i64: 32, 1>}, {transform_indices = @transform_4, window_bounds = array<i64: 1>}, {transform_indices = @transform_5, window_bounds = array<i64: 1, 128>}]} {
    %c0 = arith.constant 0 : index
    %c0_0 = arith.constant 0 : index
    %0 = vector.load %arg1[%c0, %c0_0] : memref<4x128xf32, #tpu.memory_space<vmem>>, vector<4x128xf32>
    %c0_1 = arith.constant 0 : index
    %c0_2 = arith.constant 0 : index
    %1 = vector.load %arg2[%c0_1, %c0_2] : memref<128x1xf32, #tpu.memory_space<vmem>>, vector<32x1xf32>
    %2 = vector.extract_strided_slice %0 {offsets = [0, 0], sizes = [1, 128], strides = [1, 1]} : vector<4x128xf32> to vector<1x128xf32>
    %3 = vector.broadcast %1 : vector<32x1xf32> to vector<32x128xf32>
    %4 = vector.broadcast %2 : vector<1x128xf32> to vector<32x128xf32>
    %5 = arith.mulf %3, %4 : vector<32x128xf32>
    %c32 = arith.constant 32 : index
    %c0_3 = arith.constant 0 : index
    %6 = vector.load %arg2[%c32, %c0_3] : memref<128x1xf32, #tpu.memory_space<vmem>>, vector<32x1xf32>
    %7 = vector.extract_strided_slice %0 {offsets = [1, 0], sizes = [1, 128], strides = [1, 1]} : vector<4x128xf32> to vector<1x128xf32>
    %8 = vector.broadcast %6 : vector<32x1xf32> to vector<32x128xf32>
    %9 = vector.broadcast %7 : vector<1x128xf32> to vector<32x128xf32>
    %10 = arith.mulf %8, %9 : vector<32x128xf32>
    %11 = arith.addf %5, %10 : vector<32x128xf32>
    %c64 = arith.constant 64 : index
    %c0_4 = arith.constant 0 : index
    %12 = vector.load %arg2[%c64, %c0_4] : memref<128x1xf32, #tpu.memory_space<vmem>>, vector<32x1xf32>
    %13 = vector.extract_strided_slice %0 {offsets = [2, 0], sizes = [1, 128], strides = [1, 1]} : vector<4x128xf32> to vector<1x128xf32>
    %14 = vector.broadcast %12 : vector<32x1xf32> to vector<32x128xf32>
    %15 = vector.broadcast %13 : vector<1x128xf32> to vector<32x128xf32>
    %16 = arith.mulf %14, %15 : vector<32x128xf32>
    %17 = arith.addf %11, %16 : vector<32x128xf32>
    %c96 = arith.constant 96 : index
    %c0_5 = arith.constant 0 : index
    %18 = vector.load %arg2[%c96, %c0_5] : memref<128x1xf32, #tpu.memory_space<vmem>>, vector<32x1xf32>
    %19 = vector.extract_strided_slice %0 {offsets = [3, 0], sizes = [1, 128], strides = [1, 1]} : vector<4x128xf32> to vector<1x128xf32>
    %20 = vector.broadcast %18 : vector<32x1xf32> to vector<32x128xf32>
    %21 = vector.broadcast %19 : vector<1x128xf32> to vector<32x128xf32>
    %22 = arith.mulf %20, %21 : vector<32x128xf32>
    %23 = arith.addf %17, %22 : vector<32x128xf32>
    %c0_6 = arith.constant 0 : index
    %c0_7 = arith.constant 0 : index
    %24 = vector.load %arg3[%c0_6, %c0_7] : memref<32x1xf32, #tpu.memory_space<vmem>>, vector<32x1xf32>
    %25 = vector.broadcast %24 : vector<32x1xf32> to vector<32x128xf32>
    %26 = arith.addf %23, %25 : vector<32x128xf32>
    %cst = arith.constant 0.000000e+00 : f32
    %27 = vector.broadcast %cst : f32 to vector<32x128xf32>
    %28 = arith.maximumf %26, %27 : vector<32x128xf32>
    %c0_8 = arith.constant 0 : index
    %c0_9 = arith.constant 0 : index
    %29 = vector.load %arg4[%c0_8, %c0_9] : memref<32x1xf32, #tpu.memory_space<vmem>>, vector<32x1xf32>
    %30 = vector.broadcast %29 : vector<32x1xf32> to vector<32x128xf32>
    %31 = arith.mulf %28, %30 : vector<32x128xf32>
    %cst_10 = arith.constant dense<0.000000e+00> : vector<128xf32>
    %32 = vector.multi_reduction <add>, %31, %cst_10 [0] : vector<32x128xf32> to vector<128xf32>
    %33 = vector.shape_cast %32 : vector<128xf32> to vector<1x128xf32>
    %c0_11 = arith.constant 0 : index
    %34 = memref.load %arg5[%c0_11] : memref<1xf32, #tpu.memory_space<smem>>
    %35 = vector.broadcast %34 : f32 to vector<1x128xf32>
    %36 = arith.addf %33, %35 : vector<1x128xf32>
    %c0_12 = arith.constant 0 : index
    %c0_13 = arith.constant 0 : index
    %37 = vector.load %arg6[%c0_12, %c0_13] : memref<1x128xf32, #tpu.memory_space<vmem>>, vector<1x128xf32>
    tpu.vector_store %arg6[%c0_12, %c0_13], %36 {strides = array<i32>} : memref<1x128xf32, #tpu.memory_space<vmem>>, vector<1x128xf32>,
    return
  }
  func.func @transform_0(%arg0: i32) -> (i32, i32) {
    %c0_i32 = arith.constant 0 : i32
    %c0_i32_0 = arith.constant 0 : i32
    return %c0_i32, %arg0 : i32, i32
  }
  func.func @transform_1(%arg0: i32) -> (i32, i32) {
    %c0_i32 = arith.constant 0 : i32
    %c0_i32_0 = arith.constant 0 : i32
    %c0_i32_1 = arith.constant 0 : i32
    return %c0_i32, %c0_i32_0 : i32, i32
  }
  func.func @transform_2(%arg0: i32) -> (i32, i32) {
    %c0_i32 = arith.constant 0 : i32
    %c0_i32_0 = arith.constant 0 : i32
    %c0_i32_1 = arith.constant 0 : i32
    return %c0_i32, %c0_i32_0 : i32, i32
  }
  func.func @transform_3(%arg0: i32) -> (i32, i32) {
    %c0_i32 = arith.constant 0 : i32
    %c0_i32_0 = arith.constant 0 : i32
    %c0_i32_1 = arith.constant 0 : i32
    return %c0_i32, %c0_i32_0 : i32, i32
  }
  func.func @transform_4(%arg0: i32) -> i32 {
    %c0_i32 = arith.constant 0 : i32
    %c0_i32_0 = arith.constant 0 : i32
    return %c0_i32 : i32
  }
  func.func @transform_5(%arg0: i32) -> (i32, i32) {
    %c0_i32 = arith.constant 0 : i32
    %c0_i32_0 = arith.constant 0 : i32
    return %c0_i32, %arg0 : i32, i32
  }
}

</mosaic_0001>

<llo_original>
// kernel: tpu_custom_call.1
$region0: #{tpu_custom_call.1}
  #allocation0 [shape = 'u32[]', space=smem, size = 0x4, offset = 0x4, fixed_abs, tag = 'smem constant byte address 0x4 - core index']
  #allocation1 [shape = 'u32[72,128]{1,0:T(1,128)}', space=vmem, size = 0x9000, scoped, tag = 'internal scratch']
  #allocation2 [shape = 'f32[1]{0:T(128)S(6)}', space=smem, size = 0x200, scoped, tag = 'scoped memory for tpu_custom_call.1']
  %s0 = inlined_call_operand.vmem [shape: f32[4,8], index: 0, kind: input, shape index: {}]
  %s1 = inlined_call_operand.vmem [shape: f32[128,1], index: 1, kind: input, shape index: {}]
  %s2 = inlined_call_operand.vmem [shape: f32[32,1], index: 2, kind: input, shape index: {}]
  %s3 = inlined_call_operand.vmem [shape: f32[32,1], index: 3, kind: input, shape index: {}]
  %s4 = inlined_call_operand.<no memory space> [shape: f32[1], index: 4, kind: input, shape index: {}]
  %s5 = inlined_call_operand.hbm [shape: f32[1,8], index: 5, kind: output, shape index: {}]
  %s6 = sld [smem:[#allocation0]]
  $region30: #{tpu_custom_call.1} parent=0
    _
  %s8 = ssub.s32 1, %s6
  %s9 = scalar_select 0, %s8, %s6
  %10 = sst [smem:[#allocation2]] %s4
  $region1: #{tpu_custom_call.1} parent=0
    #allocation3 [shape = 'u8[512]{0}', space=vmem, size = 0x400, scoped, tag = 'output window, operand 0, single buffered']
    #allocation4 [shape = 's32[1]{0}', space=sflag, size = 0x4, scoped, tag = 'scoped memory for tpu_custom_call.1']
    %11 = vsyncpa [#allocation4], 0
    // Predicated region
    $region2: #{tpu_custom_call.1} parent=1 // pred_check
      _
    $region3: #{tpu_custom_call.1} parent=1 // pred_check_branch
      %13 = sbr.rel (0) target = $region5
    $region4: #{tpu_custom_call.1} parent=1 // pred_region
      _
    $region5: #{tpu_custom_call.1} parent=1 // pred_fallthru
      _
    // Predicated region
    $region6: #{tpu_custom_call.1} parent=1 // pred_check
      _
    $region7: #{tpu_custom_call.1} parent=1 // pred_check_branch
      %15 = sbr.rel (0) target = $region9
    $region8: #{tpu_custom_call.1} parent=1 // pred_region
      _
    $region9: #{tpu_custom_call.1} parent=1 // pred_fallthru
      _
    // Predicated region
    $region10: #{tpu_custom_call.1} parent=1 // pred_check
      _
    $region11: #{tpu_custom_call.1} parent=1 // pred_check_branch
      %17 = sbr.rel (0) target = $region13
    $region12: #{tpu_custom_call.1} parent=1 // pred_region
      _
    $region13: #{tpu_custom_call.1} parent=1 // pred_fallthru
      _
    // Predicated region
    $region14: #{tpu_custom_call.1} parent=1 // pred_check
      _
    $region15: #{tpu_custom_call.1} parent=1 // pred_check_branch
      %19 = sbr.rel (0) target = $region17
    $region16: #{tpu_custom_call.1} parent=1 // pred_region
      _
    $region17: #{tpu_custom_call.1} parent=1 // pred_fallthru
      _
    // Predicated region
    $region18: #{tpu_custom_call.1} parent=1 // pred_check
      _
    $region19: #{tpu_custom_call.1} parent=1 // pred_check_branch
      %21 = sbr.rel (0) target = $region21
    $region20: #{tpu_custom_call.1} parent=1 // pred_region
      _
    $region21: #{tpu_custom_call.1} parent=1 // pred_fallthru
      _
    %v22 = vld [vmem:[%s0] sm:$0xf]
    %v23 = vld [vmem:[%s1] sm:$0xff]
    %v24 = vld [vmem:[%s1 + $0x8] sm:$0xff]
    %v25 = vld [vmem:[%s1 + $0x10] sm:$0xff]
    %v26 = vld [vmem:[%s1 + $0x18] sm:$0xff]
    %28 = vset.pattern.permute.xlu0 0
    %29 = vperm.xlu0 %28, %v23
    %v30 = vpop.permute.xlu0 %29
    %33 = vset.pattern.permute.xlu0 0
    %34 = vperm.xlu0 %33, %v24
    %v35 = vpop.permute.xlu0 %34
    %38 = vset.pattern.permute.xlu0 0
    %39 = vperm.xlu0 %38, %v25
    %v40 = vpop.permute.xlu0 %39
    %43 = vset.pattern.permute.xlu0 0
    %44 = vperm.xlu0 %43, %v26
    %v45 = vpop.permute.xlu0 %44
    %v47 = vperm.slane %v22, 0
    %v48 = vmul.f32 %v30, %v47
    %v49 = vmul.f32 %v35, %v47
    %v50 = vmul.f32 %v40, %v47
    %v51 = vmul.f32 %v45, %v47
    %v52 = vld [vmem:[%s1 + $0x20] sm:$0xff]
    %v53 = vld [vmem:[%s1 + $0x28] sm:$0xff]
    %v54 = vld [vmem:[%s1 + $0x30] sm:$0xff]
    %v55 = vld [vmem:[%s1 + $0x38] sm:$0xff]
    %57 = vset.pattern.permute.xlu0 0
    %58 = vperm.xlu0 %57, %v52
    %v59 = vpop.permute.xlu0 %58
    %62 = vset.pattern.permute.xlu0 0
    %63 = vperm.xlu0 %62, %v53
    %v64 = vpop.permute.xlu0 %63
    %67 = vset.pattern.permute.xlu0 0
    %68 = vperm.xlu0 %67, %v54
    %v69 = vpop.permute.xlu0 %68
    %72 = vset.pattern.permute.xlu0 0
    %73 = vperm.xlu0 %72, %v55
    %v74 = vpop.permute.xlu0 %73
    %v76 = vperm.slane %v22, 1
    %v77 = vmul.f32 %v59, %v76
    %v78 = vmul.f32 %v64, %v76
    %v79 = vmul.f32 %v69, %v76
    %v80 = vmul.f32 %v74, %v76
    %v81 = vadd.f32 %v48, %v77
    %v82 = vadd.f32 %v49, %v78
    %v83 = vadd.f32 %v50, %v79
    %v84 = vadd.f32 %v51, %v80
    %v85 = vld [vmem:[%s1 + $0x40] sm:$0xff]
    %v86 = vld [vmem:[%s1 + $0x48] sm:$0xff]
    %v87 = vld [vmem:[%s1 + $0x50] sm:$0xff]
    %v88 = vld [vmem:[%s1 + $0x58] sm:$0xff]
    %90 = vset.pattern.permute.xlu0 0
    %91 = vperm.xlu0 %90, %v85
    %v92 = vpop.permute.xlu0 %91
    %95 = vset.pattern.permute.xlu0 0
    %96 = vperm.xlu0 %95, %v86
    %v97 = vpop.permute.xlu0 %96
    %100 = vset.pattern.permute.xlu0 0
    %101 = vperm.xlu0 %100, %v87
    %v102 = vpop.permute.xlu0 %101
    %105 = vset.pattern.permute.xlu0 0
    %106 = vperm.xlu0 %105, %v88
    %v107 = vpop.permute.xlu0 %106
    %v109 = vperm.slane %v22, 2
    %v110 = vmul.f32 %v92, %v109
    %v111 = vmul.f32 %v97, %v109
    %v112 = vmul.f32 %v102, %v109
    %v113 = vmul.f32 %v107, %v109
    %v114 = vadd.f32 %v81, %v110
    %v115 = vadd.f32 %v82, %v111
    %v116 = vadd.f32 %v83, %v112
    %v117 = vadd.f32 %v84, %v113
    %v118 = vld [vmem:[%s1 + $0x60] sm:$0xff]
    %v119 = vld [vmem:[%s1 + $0x68] sm:$0xff]
    %v120 = vld [vmem:[%s1 + $0x70] sm:$0xff]
    %v121 = vld [vmem:[%s1 + $0x78] sm:$0xff]
    %123 = vset.pattern.permute.xlu0 0
    %124 = vperm.xlu0 %123, %v118
    %v125 = vpop.permute.xlu0 %124
    %128 = vset.pattern.permute.xlu0 0
    %129 = vperm.xlu0 %128, %v119
    %v130 = vpop.permute.xlu0 %129
    %133 = vset.pattern.permute.xlu0 0
    %134 = vperm.xlu0 %133, %v120
    %v135 = vpop.permute.xlu0 %134
    %138 = vset.pattern.permute.xlu0 0
    %139 = vperm.xlu0 %138, %v121
    %v140 = vpop.permute.xlu0 %139
    %v142 = vperm.slane %v22, 3
    %v143 = vmul.f32 %v125, %v142
    %v144 = vmul.f32 %v130, %v142
    %v145 = vmul.f32 %v135, %v142
    %v146 = vmul.f32 %v140, %v142
    %v147 = vadd.f32 %v114, %v143
    %v148 = vadd.f32 %v115, %v144
    %v149 = vadd.f32 %v116, %v145
    %v150 = vadd.f32 %v117, %v146
    %v151 = vld [vmem:[%s2] sm:$0xff]
    %v152 = vld [vmem:[%s2 + $0x8] sm:$0xff]
    %v153 = vld [vmem:[%s2 + $0x10] sm:$0xff]
    %v154 = vld [vmem:[%s2 + $0x18] sm:$0xff]
    %156 = vset.pattern.permute.xlu0 0
    %157 = vperm.xlu0 %156, %v151
    %v158 = vpop.permute.xlu0 %157
    %161 = vset.pattern.permute.xlu0 0
    %162 = vperm.xlu0 %161, %v152
    %v163 = vpop.permute.xlu0 %162
    %166 = vset.pattern.permute.xlu0 0
    %167 = vperm.xlu0 %166, %v153
    %v168 = vpop.permute.xlu0 %167
    %171 = vset.pattern.permute.xlu0 0
    %172 = vperm.xlu0 %171, %v154
    %v173 = vpop.permute.xlu0 %172
    %v175 = vadd.f32 %v147, %v158
    %v176 = vadd.f32 %v148, %v163
    %v177 = vadd.f32 %v149, %v168
    %v178 = vadd.f32 %v150, %v173
    %v179 = vmax.f32 %v175, 0.0
    %v180 = vmax.f32 %v176, 0.0
    %v181 = vmax.f32 %v177, 0.0
    %v182 = vmax.f32 %v178, 0.0
    %v183 = vld [vmem:[%s3] sm:$0xff]
    %v184 = vld [vmem:[%s3 + $0x8] sm:$0xff]
    %v185 = vld [vmem:[%s3 + $0x10] sm:$0xff]
    %v186 = vld [vmem:[%s3 + $0x18] sm:$0xff]
    %188 = vset.pattern.permute.xlu0 0
    %189 = vperm.xlu0 %188, %v183
    %v190 = vpop.permute.xlu0 %189
    %193 = vset.pattern.permute.xlu0 0
    %194 = vperm.xlu0 %193, %v184
    %v195 = vpop.permute.xlu0 %194
    %198 = vset.pattern.permute.xlu0 0
    %199 = vperm.xlu0 %198, %v185
    %v200 = vpop.permute.xlu0 %199
    %203 = vset.pattern.permute.xlu0 0
    %204 = vperm.xlu0 %203, %v186
    %v205 = vpop.permute.xlu0 %204
    %v207 = vmul.f32 %v179, %v190
    %v208 = vmul.f32 %v180, %v195
    %v209 = vmul.f32 %v181, %v200
    %v210 = vmul.f32 %v182, %v205
    %v211 = vadd.f32 %v207, %v208
    %v212 = vadd.f32 %v211, %v209
    %v213 = vadd.f32 %v212, %v210
    %v214 = vrot.slane %v213, 4
    %v215 = vadd.f32 %v213, %v214
    %v216 = vrot.slane %v215, 2
    %v217 = vadd.f32 %v215, %v216
    %v218 = vrot.slane %v217, 1
    %v219 = vadd.f32 %v217, %v218
    %s220 = sld [smem:[#allocation2]]
    %v221 = vstv %s220
    %v222 = vadd.f32 %v219, %v221
    %223 = vst [vmem:[#allocation3] sm:$0x1] %v222
    // Predicated region
    $region22: #{tpu_custom_call.1} parent=1 // pred_check
      _
    $region23: #{tpu_custom_call.1} parent=1 // pred_check_branch
      %225 = sbr.rel (0) target = $region25
    $region24: #{tpu_custom_call.1} parent=1 // pred_region
      %227 = vsyncadd [#allocation4], 0
      %s229 = sshll.u32 [#allocation3], 4
      %s230 = int_to_ptr.vmem [resolvable:$true] %s229
      %s231 = sshll.u32 %s5, 4
      %s232 = int_to_ptr.hbm [resolvable:$true] %s231
      %234 = dma.vmem_to_hbm [thread:$0]  %s230, 16, %s232, [#allocation4]
    $region25: #{tpu_custom_call.1} parent=1 // pred_fallthru
      _
    // Predicated region
    $region26: #{tpu_custom_call.1} parent=1 // pred_check
      _
    $region27: #{tpu_custom_call.1} parent=1 // pred_check_branch
      %236 = sbr.rel (0) target = $region29
    $region28: #{tpu_custom_call.1} parent=1 // pred_region
      %238 = dma.done [#allocation4], 16
    $region29: #{tpu_custom_call.1} parent=1 // pred_fallthru
      _
    %239 = vsyncpa [#allocation4], 1

</llo_original>
